<compile_context>
chip_gen: v7x
topology: tpu7x:2x2x1
jax: 0.10.0
libtpu: 0.0.40
codegen_flags: <defaults>
</compile_context>

<pallas_src>
import functools

import jax
import jax.numpy as jnp
from jax.experimental import pallas as pl
from jax.experimental.pallas import tpu as pltpu


NEG_SLOPE = 0.01  # nn.LeakyReLU default negative_slope


def _round_up(x, m):
    return ((x + m - 1) // m) * m


def _leaky_relu(x):
    return jnp.where(x > 0, x, NEG_SLOPE * x)


def seq2seq_kernel(x_ref, w_ref, b_ref, o_ref, h_ref, *, layer_dims, acts,
                   chunk, use_stride0):
    """One batch tile.  Activations are (features, lanes): batch on the 128-lane axis.

    x_ref : (in_features, TB)   pipelined input tile (lane-dense)
    w_ref : (L, P, P)           packed W^T, VMEM-resident across grid steps
    b_ref : (L, P, 1)           packed biases
    o_ref : (out_features, TB)  output tile (lane-dense -> unmasked stores)
    h_ref : (P, chunk)          VMEM scratch staging one chunk's activations
    """
    tb = x_ref.shape[1]
    in_f0 = layer_dims[0][0]
    n_layers = len(layer_dims)

    # Statically unrolled lane-chunk loop: keeps the per-chunk working set in
    # vregs while the outer (big) tile amortizes DMA / grid-step overhead.
    for lo in range(0, tb, chunk):
        # Stage the x chunk so every layer reads its per-k broadcast rows from
        # VMEM (stride-0 loads on the vld slots) instead of emitting XLU
        # sublane broadcasts from register values.
        h_ref[0:in_f0, :] = x_ref[:, lo:lo + chunk]

        y = None
        for l, (in_f, out_f) in enumerate(layer_dims):
            wt = w_ref[l, :out_f, :in_f]              # (out_f, in_f) == W_l^T
            bias = b_ref[l, :out_f, :]                # (out_f, 1)
            y = None
            for k in range(in_f):
                if use_stride0:
                    # Row k replicated out_f times straight from the load unit.
                    row = h_ref[pl.ds(k, out_f, stride=0), :]   # (out_f, chunk)
                else:
                    row = h_ref[k:k + 1, :]                     # (1, chunk) -> bcast in mul
                term = wt[:, k:k + 1] * row           # VPU broadcast-MAC
                y = term if y is None else y + term
            y = y + bias                              # bias broadcast over lanes
            if acts[l]:                               # LeakyReLU (Dropout == identity, eval)
                y = _leaky_relu(y)
            if l + 1 < n_layers:
                h_ref[0:out_f, :] = y                 # stage for the next layer
        o_ref[:, lo:lo + chunk] = y.astype(o_ref.dtype)


def fuse_and_pack(params):
    """Fuse the two activation-free back-to-back linears and pack parameters.

    params: list of (W, b) with W (in_f, out_f), b (1, out_f) in x @ W + b form.
    Returns (w_packed (L,P,P) holding W^T, b_packed (L,P,1), dims, act flags).
    """
    n = len(params)
    ws = [jnp.asarray(w, jnp.float32) for w, _ in params]
    bs = [jnp.reshape(jnp.asarray(b, jnp.float32), (1, -1)) for _, b in params]
    acts = [i not in (n // 2 - 1, n - 1) for i in range(n)]   # LeakyReLU flags

    # Encoder's last linear (no activation) feeds the decoder's first linear
    # directly (Dropout == identity in eval), so the composition is exact:
    #   x @ (W_e @ W_d) + (b_e @ W_d + b_d)
    e = n // 2 - 1
    w_f = ws[e] @ ws[e + 1]
    b_f = bs[e] @ ws[e + 1] + bs[e + 1]
    ws = ws[:e] + [w_f] + ws[e + 2:]
    bs = bs[:e] + [b_f] + bs[e + 2:]
    acts = acts[:e] + [acts[e + 1]] + acts[e + 2:]

    dims = tuple((w.shape[0], w.shape[1]) for w in ws)
    pad_f = _round_up(max(max(d) for d in dims), 8)
    n_layers = len(ws)
    w_packed = jnp.zeros((n_layers, pad_f, pad_f), jnp.float32)
    b_packed = jnp.zeros((n_layers, pad_f, 1), jnp.float32)
    for l, (w, b) in enumerate(zip(ws, bs)):
        in_f, out_f = w.shape
        w_packed = w_packed.at[l, :out_f, :in_f].set(jnp.transpose(w))
        b_packed = b_packed.at[l, :out_f, 0].set(b[0])
    return w_packed, b_packed, dims, tuple(acts)


def _probe_stride0_broadcast_load():
    """Check that `ref[pl.ds(k, n, stride=0), :]` traces, lowers and is correct
    on this jax/libtpu; otherwise the kernel falls back to implicit broadcasts."""
    def probe_kernel(x_ref, o_ref):
        o_ref[...] = x_ref[pl.ds(1, 8, stride=0), :]
    try:
        x = jnp.arange(8 * 128, dtype=jnp.float32).reshape(8, 128)
        out = pl.pallas_call(
            probe_kernel,
            out_shape=jax.ShapeDtypeStruct((8, 128), jnp.float32))(x)
        out = jax.block_until_ready(out)
        return bool(jnp.allclose(out, jnp.broadcast_to(x[1:2, :], (8, 128))))
    except Exception:
        return False


def build_base_seq2seq(params, *, block_batch=8192, chunk=512):
    """Pack parameters ONCE and return a jitted forward(x) -> recon_x."""
    w_packed, b_packed, dims, acts = fuse_and_pack(params)
    in_features = dims[0][0]
    out_features = dims[-1][1]
    pad_f = w_packed.shape[1]
    use_stride0 = _probe_stride0_broadcast_load()

    chunk = _round_up(max(128, chunk), 128)
    block_batch = _round_up(max(chunk, block_batch), chunk)

    @jax.jit
    def forward(x):
        batch = x.shape[0]
        assert x.shape[1] == in_features

        # Batch tile: big enough to amortize per-grid-step overhead, capped so
        # the grid keeps >= 2 blocks when possible (v7x: 2 TCs split the
        # "parallel" axis; harmless on v5e/v6e).
        b128 = _round_up(batch, 128)
        tb = min(block_batch, max(128, _round_up(-(-b128 // 2), 128)))
        if tb >= chunk:
            tb = _round_up(tb, chunk)          # whole lane-chunks per tile
        tile_chunk = min(chunk, tb)
        assert tb % tile_chunk == 0
        padded = _round_up(batch, tb)

        # Lane-dense layout (batch on the 128-lane axis).  Pad + transpose run
        # inside this jit -> one fused XLA pass; zero padding keeps padded
        # lanes finite (they are sliced away below).
        x_t = jnp.pad(jnp.transpose(x).astype(jnp.float32),
                      ((0, 0), (0, padded - batch)))

        kernel = functools.partial(
            seq2seq_kernel, layer_dims=dims, acts=acts, chunk=tile_chunk,
            use_stride0=use_stride0)

        out_t = pl.pallas_call(
            kernel,
            out_shape=jax.ShapeDtypeStruct((out_features, padded), x.dtype),
            grid=(padded // tb,),
            in_specs=[
                pl.BlockSpec((in_features, tb), lambda i: (0, i)),  # pipelined x tile
                pl.BlockSpec(w_packed.shape, lambda i: (0, 0, 0)),  # VMEM-resident params
                pl.BlockSpec(b_packed.shape, lambda i: (0, 0, 0)),
            ],
            out_specs=pl.BlockSpec((out_features, tb), lambda i: (0, i)),
            scratch_shapes=[pltpu.VMEM((pad_f, tile_chunk), jnp.float32)],
            compiler_params=pltpu.CompilerParams(
                dimension_semantics=("parallel",)),
        )(x_t, w_packed, b_packed)

        # Output transpose + slice also fuse inside this jit (kept wrapper-side:
        # a (tb, 16) lane-masked store could bind v5e's single vst slot).
        return jnp.transpose(out_t)[:batch, :]

    return forward


def init_params(key, input_size=16, hidden_size=2, output_size=16, dtype=jnp.float32):
    """Deterministic nn.Linear-style init: U(-1/sqrt(fan_in), 1/sqrt(fan_in))."""
    layer_dims = [
        (input_size, 4 * hidden_size),
        (4 * hidden_size, 2 * hidden_size),
        (2 * hidden_size, hidden_size),
        (hidden_size, 2 * hidden_size),
        (2 * hidden_size, 4 * hidden_size),
        (4 * hidden_size, output_size),
    ]
    params = []
    keys = jax.random.split(key, 2 * len(layer_dims))
    for i, (fan_in, fan_out) in enumerate(layer_dims):
        bound = 1.0 / (fan_in ** 0.5)
        w = jax.random.uniform(keys[2 * i], (fan_in, fan_out), dtype,
                               minval=-bound, maxval=bound)
        b = jax.random.uniform(keys[2 * i + 1], (1, fan_out), dtype,
                               minval=-bound, maxval=bound)
        params.append((w, b))
    return params


def base_seq2seq_ref(x, params):
    """Pure-JAX reference of the original 6-layer forward pass (eval mode)."""
    h = x
    n = len(params)
    skip_act = (n // 2 - 1, n - 1)
    for i, (w, b) in enumerate(params):
        h = h @ w + jnp.reshape(b, (1, -1))
        if i not in skip_act:
            h = jnp.where(h > 0, h, NEG_SLOPE * h)
    return h


if __name__ == "__main__":
    input_size, hidden_size, output_size = 16, 2, 16

    key = jax.random.PRNGKey(0)
    k_params, k_x1, k_x2 = jax.random.split(key, 3)
    params = init_params(k_params, input_size, hidden_size, output_size)

    # Pack/fuse parameters once; returns a jitted forward.
    forward = build_base_seq2seq(params)

    # Primary small-shape check.
    x = jax.random.normal(k_x1, (8, input_size), jnp.float32)
    out = jax.block_until_ready(forward(x))
    ref = base_seq2seq_ref(x, params)
    assert out.shape == (8, output_size)
    assert jnp.allclose(out, ref, atol=1e-5, rtol=1e-5), "mismatch vs reference (batch=8)"

    # Secondary check exercising grid > 1 and multiple lane-chunks per tile.
    x2 = jax.random.normal(k_x2, (2500, input_size), jnp.float32)
    out2 = jax.block_until_ready(forward(x2))
    ref2 = base_seq2seq_ref(x2, params)
    assert out2.shape == (2500, output_size)
    assert jnp.allclose(out2, ref2, atol=1e-5, rtol=1e-5), "mismatch vs reference (batch=2500)"

    print("KERNEL_OK")
</pallas_src>

<mosaic_0001>
module attributes {stable_mosaic.version = 11 : i64} {
  func.func @probe_kernel(%arg0: memref<8x128xf32, #tpu.memory_space<vmem>>, %arg1: memref<8x128xf32, #tpu.memory_space<vmem>>) attributes {dimension_semantics = [], scalar_prefetch = 0 : i64, scratch_operands = 0 : i64, tpu.core_type = #tpu.core_type<tc>} {
    %c1 = arith.constant 1 : index
    %c0 = arith.constant 0 : index
    %0 = tpu.strided_load %arg0[%c1, %c0] {strides = array<i32: 0, 1>} : memref<8x128xf32, #tpu.memory_space<vmem>>, vector<8x128xf32>
    %c0_0 = arith.constant 0 : index
    %c0_1 = arith.constant 0 : index
    %1 = vector.load %arg1[%c0_0, %c0_1] : memref<8x128xf32, #tpu.memory_space<vmem>>, vector<8x128xf32>
    tpu.vector_store %arg1[%c0_0, %c0_1], %0 {strides = array<i32>} : memref<8x128xf32, #tpu.memory_space<vmem>>, vector<8x128xf32>,
    return
  }
}

module attributes {stable_mosaic.version = 11 : i64} {
  func.func @seq2seq_kernel(%arg0: i32, %arg1: memref<16x128xf32, #tpu.memory_space<vmem>>, %arg2: memref<5x16x16xf32, #tpu.memory_space<vmem>>, %arg3: memref<5x16x1xf32, #tpu.memory_space<vmem>>, %arg4: memref<16x128xf32, #tpu.memory_space<vmem>>, %arg5: memref<16x128xf32, #tpu.memory_space<vmem>>) attributes {dimension_semantics = [#tpu.dimension_semantics<parallel>], iteration_bounds = array<i64: 1>, scalar_prefetch = 0 : i64, scratch_operands = 1 : i64, tpu.core_type = #tpu.core_type<tc>, window_params = [{transform_indices = @transform_0, window_bounds = array<i64: 16, 128>}, {pipeline_mode = #tpu.pipeline_mode<synchronous>, transform_indices = @transform_1, window_bounds = array<i64: 5, 16, 16>}, {pipeline_mode = #tpu.pipeline_mode<synchronous>, transform_indices = @transform_2, window_bounds = array<i64: 5, 16, 1>}, {transform_indices = @transform_3, window_bounds = array<i64: 16, 128>}]} {
    %c0 = arith.constant 0 : index
    %c0_0 = arith.constant 0 : index
    %0 = vector.load %arg1[%c0, %c0_0] : memref<16x128xf32, #tpu.memory_space<vmem>>, vector<16x128xf32>
    %c0_1 = arith.constant 0 : index
    %c0_2 = arith.constant 0 : index
    %1 = vector.load %arg5[%c0_1, %c0_2] : memref<16x128xf32, #tpu.memory_space<vmem>>, vector<16x128xf32>
    tpu.vector_store %arg5[%c0_1, %c0_2], %0 {strides = array<i32>} : memref<16x128xf32, #tpu.memory_space<vmem>>, vector<16x128xf32>,
    %c0_3 = arith.constant 0 : index
    %c0_4 = arith.constant 0 : index
    %c0_5 = arith.constant 0 : index
    %2 = vector.load %arg2[%c0_3, %c0_4, %c0_5] : memref<5x16x16xf32, #tpu.memory_space<vmem>>, vector<1x8x16xf32>
    %3 = vector.shape_cast %2 : vector<1x8x16xf32> to vector<8x16xf32>
    %c0_6 = arith.constant 0 : index
    %c0_7 = arith.constant 0 : index
    %c0_8 = arith.constant 0 : index
    %4 = vector.load %arg3[%c0_6, %c0_7, %c0_8] : memref<5x16x1xf32, #tpu.memory_space<vmem>>, vector<1x8x1xf32>
    %5 = vector.shape_cast %4 : vector<1x8x1xf32> to vector<8x1xf32>
    %c0_9 = arith.constant 0 : index
    %c0_10 = arith.constant 0 : index
    %6 = vector.load %arg5[%c0_9, %c0_10] : memref<16x128xf32, #tpu.memory_space<vmem>>, vector<1x128xf32>
    %7 = vector.extract_strided_slice %3 {offsets = [0, 0], sizes = [8, 1], strides = [1, 1]} : vector<8x16xf32> to vector<8x1xf32>
    %8 = vector.broadcast %7 : vector<8x1xf32> to vector<8x128xf32>
    %9 = vector.broadcast %6 : vector<1x128xf32> to vector<8x128xf32>
    %10 = arith.mulf %8, %9 : vector<8x128xf32>
    %c1 = arith.constant 1 : index
    %c0_11 = arith.constant 0 : index
    %11 = vector.load %arg5[%c1, %c0_11] : memref<16x128xf32, #tpu.memory_space<vmem>>, vector<1x128xf32>
    %12 = vector.extract_strided_slice %3 {offsets = [0, 1], sizes = [8, 1], strides = [1, 1]} : vector<8x16xf32> to vector<8x1xf32>
    %13 = vector.broadcast %12 : vector<8x1xf32> to vector<8x128xf32>
    %14 = vector.broadcast %11 : vector<1x128xf32> to vector<8x128xf32>
    %15 = arith.mulf %13, %14 : vector<8x128xf32>
    %16 = arith.addf %10, %15 : vector<8x128xf32>
    %c2 = arith.constant 2 : index
    %c0_12 = arith.constant 0 : index
    %17 = vector.load %arg5[%c2, %c0_12] : memref<16x128xf32, #tpu.memory_space<vmem>>, vector<1x128xf32>
    %18 = vector.extract_strided_slice %3 {offsets = [0, 2], sizes = [8, 1], strides = [1, 1]} : vector<8x16xf32> to vector<8x1xf32>
    %19 = vector.broadcast %18 : vector<8x1xf32> to vector<8x128xf32>
    %20 = vector.broadcast %17 : vector<1x128xf32> to vector<8x128xf32>
    %21 = arith.mulf %19, %20 : vector<8x128xf32>
    %22 = arith.addf %16, %21 : vector<8x128xf32>
    %c3 = arith.constant 3 : index
    %c0_13 = arith.constant 0 : index
    %23 = vector.load %arg5[%c3, %c0_13] : memref<16x128xf32, #tpu.memory_space<vmem>>, vector<1x128xf32>
    %24 = vector.extract_strided_slice %3 {offsets = [0, 3], sizes = [8, 1], strides = [1, 1]} : vector<8x16xf32> to vector<8x1xf32>
    %25 = vector.broadcast %24 : vector<8x1xf32> to vector<8x128xf32>
    %26 = vector.broadcast %23 : vector<1x128xf32> to vector<8x128xf32>
    %27 = arith.mulf %25, %26 : vector<8x128xf32>
    %28 = arith.addf %22, %27 : vector<8x128xf32>
    %c4 = arith.constant 4 : index
    %c0_14 = arith.constant 0 : index
    %29 = vector.load %arg5[%c4, %c0_14] : memref<16x128xf32, #tpu.memory_space<vmem>>, vector<1x128xf32>
    %30 = vector.extract_strided_slice %3 {offsets = [0, 4], sizes = [8, 1], strides = [1, 1]} : vector<8x16xf32> to vector<8x1xf32>
    %31 = vector.broadcast %30 : vector<8x1xf32> to vector<8x128xf32>
    %32 = vector.broadcast %29 : vector<1x128xf32> to vector<8x128xf32>
    %33 = arith.mulf %31, %32 : vector<8x128xf32>
    %34 = arith.addf %28, %33 : vector<8x128xf32>
    %c5 = arith.constant 5 : index
    %c0_15 = arith.constant 0 : index
    %35 = vector.load %arg5[%c5, %c0_15] : memref<16x128xf32, #tpu.memory_space<vmem>>, vector<1x128xf32>
    %36 = vector.extract_strided_slice %3 {offsets = [0, 5], sizes = [8, 1], strides = [1, 1]} : vector<8x16xf32> to vector<8x1xf32>
    %37 = vector.broadcast %36 : vector<8x1xf32> to vector<8x128xf32>
    %38 = vector.broadcast %35 : vector<1x128xf32> to vector<8x128xf32>
    %39 = arith.mulf %37, %38 : vector<8x128xf32>
    %40 = arith.addf %34, %39 : vector<8x128xf32>
    %c6 = arith.constant 6 : index
    %c0_16 = arith.constant 0 : index
    %41 = vector.load %arg5[%c6, %c0_16] : memref<16x128xf32, #tpu.memory_space<vmem>>, vector<1x128xf32>
    %42 = vector.extract_strided_slice %3 {offsets = [0, 6], sizes = [8, 1], strides = [1, 1]} : vector<8x16xf32> to vector<8x1xf32>
    %43 = vector.broadcast %42 : vector<8x1xf32> to vector<8x128xf32>
    %44 = vector.broadcast %41 : vector<1x128xf32> to vector<8x128xf32>
    %45 = arith.mulf %43, %44 : vector<8x128xf32>
    %46 = arith.addf %40, %45 : vector<8x128xf32>
    %c7 = arith.constant 7 : index
    %c0_17 = arith.constant 0 : index
    %47 = vector.load %arg5[%c7, %c0_17] : memref<16x128xf32, #tpu.memory_space<vmem>>, vector<1x128xf32>
    %48 = vector.extract_strided_slice %3 {offsets = [0, 7], sizes = [8, 1], strides = [1, 1]} : vector<8x16xf32> to vector<8x1xf32>
    %49 = vector.broadcast %48 : vector<8x1xf32> to vector<8x128xf32>
    %50 = vector.broadcast %47 : vector<1x128xf32> to vector<8x128xf32>
    %51 = arith.mulf %49, %50 : vector<8x128xf32>
    %52 = arith.addf %46, %51 : vector<8x128xf32>
    %c8 = arith.constant 8 : index
    %c0_18 = arith.constant 0 : index
    %53 = vector.load %arg5[%c8, %c0_18] : memref<16x128xf32, #tpu.memory_space<vmem>>, vector<1x128xf32>
    %54 = vector.extract_strided_slice %3 {offsets = [0, 8], sizes = [8, 1], strides = [1, 1]} : vector<8x16xf32> to vector<8x1xf32>
    %55 = vector.broadcast %54 : vector<8x1xf32> to vector<8x128xf32>
    %56 = vector.broadcast %53 : vector<1x128xf32> to vector<8x128xf32>
    %57 = arith.mulf %55, %56 : vector<8x128xf32>
    %58 = arith.addf %52, %57 : vector<8x128xf32>
    %c9 = arith.constant 9 : index
    %c0_19 = arith.constant 0 : index
    %59 = vector.load %arg5[%c9, %c0_19] : memref<16x128xf32, #tpu.memory_space<vmem>>, vector<1x128xf32>
    %60 = vector.extract_strided_slice %3 {offsets = [0, 9], sizes = [8, 1], strides = [1, 1]} : vector<8x16xf32> to vector<8x1xf32>
    %61 = vector.broadcast %60 : vector<8x1xf32> to vector<8x128xf32>
    %62 = vector.broadcast %59 : vector<1x128xf32> to vector<8x128xf32>
    %63 = arith.mulf %61, %62 : vector<8x128xf32>
    %64 = arith.addf %58, %63 : vector<8x128xf32>
    %c10 = arith.constant 10 : index
    %c0_20 = arith.constant 0 : index
    %65 = vector.load %arg5[%c10, %c0_20] : memref<16x128xf32, #tpu.memory_space<vmem>>, vector<1x128xf32>
    %66 = vector.extract_strided_slice %3 {offsets = [0, 10], sizes = [8, 1], strides = [1, 1]} : vector<8x16xf32> to vector<8x1xf32>
    %67 = vector.broadcast %66 : vector<8x1xf32> to vector<8x128xf32>
    %68 = vector.broadcast %65 : vector<1x128xf32> to vector<8x128xf32>
    %69 = arith.mulf %67, %68 : vector<8x128xf32>
    %70 = arith.addf %64, %69 : vector<8x128xf32>
    %c11 = arith.constant 11 : index
    %c0_21 = arith.constant 0 : index
    %71 = vector.load %arg5[%c11, %c0_21] : memref<16x128xf32, #tpu.memory_space<vmem>>, vector<1x128xf32>
    %72 = vector.extract_strided_slice %3 {offsets = [0, 11], sizes = [8, 1], strides = [1, 1]} : vector<8x16xf32> to vector<8x1xf32>
    %73 = vector.broadcast %72 : vector<8x1xf32> to vector<8x128xf32>
    %74 = vector.broadcast %71 : vector<1x128xf32> to vector<8x128xf32>
    %75 = arith.mulf %73, %74 : vector<8x128xf32>
    %76 = arith.addf %70, %75 : vector<8x128xf32>
    %c12 = arith.constant 12 : index
    %c0_22 = arith.constant 0 : index
    %77 = vector.load %arg5[%c12, %c0_22] : memref<16x128xf32, #tpu.memory_space<vmem>>, vector<1x128xf32>
    %78 = vector.extract_strided_slice %3 {offsets = [0, 12], sizes = [8, 1], strides = [1, 1]} : vector<8x16xf32> to vector<8x1xf32>
    %79 = vector.broadcast %78 : vector<8x1xf32> to vector<8x128xf32>
    %80 = vector.broadcast %77 : vector<1x128xf32> to vector<8x128xf32>
    %81 = arith.mulf %79, %80 : vector<8x128xf32>
    %82 = arith.addf %76, %81 : vector<8x128xf32>
    %c13 = arith.constant 13 : index
    %c0_23 = arith.constant 0 : index
    %83 = vector.load %arg5[%c13, %c0_23] : memref<16x128xf32, #tpu.memory_space<vmem>>, vector<1x128xf32>
    %84 = vector.extract_strided_slice %3 {offsets = [0, 13], sizes = [8, 1], strides = [1, 1]} : vector<8x16xf32> to vector<8x1xf32>
    %85 = vector.broadcast %84 : vector<8x1xf32> to vector<8x128xf32>
    %86 = vector.broadcast %83 : vector<1x128xf32> to vector<8x128xf32>
    %87 = arith.mulf %85, %86 : vector<8x128xf32>
    %88 = arith.addf %82, %87 : vector<8x128xf32>
    %c14 = arith.constant 14 : index
    %c0_24 = arith.constant 0 : index
    %89 = vector.load %arg5[%c14, %c0_24] : memref<16x128xf32, #tpu.memory_space<vmem>>, vector<1x128xf32>
    %90 = vector.extract_strided_slice %3 {offsets = [0, 14], sizes = [8, 1], strides = [1, 1]} : vector<8x16xf32> to vector<8x1xf32>
    %91 = vector.broadcast %90 : vector<8x1xf32> to vector<8x128xf32>
    %92 = vector.broadcast %89 : vector<1x128xf32> to vector<8x128xf32>
    %93 = arith.mulf %91, %92 : vector<8x128xf32>
    %94 = arith.addf %88, %93 : vector<8x128xf32>
    %c15 = arith.constant 15 : index
    %c0_25 = arith.constant 0 : index
    %95 = vector.load %arg5[%c15, %c0_25] : memref<16x128xf32, #tpu.memory_space<vmem>>, vector<1x128xf32>
    %96 = vector.extract_strided_slice %3 {offsets = [0, 15], sizes = [8, 1], strides = [1, 1]} : vector<8x16xf32> to vector<8x1xf32>
    %97 = vector.broadcast %96 : vector<8x1xf32> to vector<8x128xf32>
    %98 = vector.broadcast %95 : vector<1x128xf32> to vector<8x128xf32>
    %99 = arith.mulf %97, %98 : vector<8x128xf32>
    %100 = arith.addf %94, %99 : vector<8x128xf32>
    %101 = vector.broadcast %5 : vector<8x1xf32> to vector<8x128xf32>
    %102 = arith.addf %100, %101 : vector<8x128xf32>
    %cst = arith.constant 0.000000e+00 : f32
    %103 = vector.broadcast %cst : f32 to vector<8x128xf32>
    %104 = arith.cmpf ogt, %102, %103 : vector<8x128xf32>
    %cst_26 = arith.constant 0.00999999977 : f32
    %105 = vector.broadcast %cst_26 : f32 to vector<8x128xf32>
    %106 = arith.mulf %105, %102 : vector<8x128xf32>
    %107 = arith.select %104, %102, %106 : vector<8x128xi1>, vector<8x128xf32>
    %c0_27 = arith.constant 0 : index
    %c0_28 = arith.constant 0 : index
    %108 = vector.load %arg5[%c0_27, %c0_28] : memref<16x128xf32, #tpu.memory_space<vmem>>, vector<8x128xf32>
    tpu.vector_store %arg5[%c0_27, %c0_28], %107 {strides = array<i32>} : memref<16x128xf32, #tpu.memory_space<vmem>>, vector<8x128xf32>,
    %c1_29 = arith.constant 1 : index
    %c0_30 = arith.constant 0 : index
    %c0_31 = arith.constant 0 : index
    %109 = vector.load %arg2[%c1_29, %c0_30, %c0_31] : memref<5x16x16xf32, #tpu.memory_space<vmem>>, vector<1x4x8xf32>
    %110 = vector.shape_cast %109 : vector<1x4x8xf32> to vector<4x8xf32>
    %c1_32 = arith.constant 1 : index
    %c0_33 = arith.constant 0 : index
    %c0_34 = arith.constant 0 : index
    %111 = vector.load %arg3[%c1_32, %c0_33, %c0_34] : memref<5x16x1xf32, #tpu.memory_space<vmem>>, vector<1x4x1xf32>
    %112 = vector.shape_cast %111 : vector<1x4x1xf32> to vector<4x1xf32>
    %c0_35 = arith.constant 0 : index
    %c0_36 = arith.constant 0 : index
    %113 = vector.load %arg5[%c0_35, %c0_36] : memref<16x128xf32, #tpu.memory_space<vmem>>, vector<1x128xf32>
    %114 = vector.extract_strided_slice %110 {offsets = [0, 0], sizes = [4, 1], strides = [1, 1]} : vector<4x8xf32> to vector<4x1xf32>
    %115 = vector.broadcast %114 : vector<4x1xf32> to vector<4x128xf32>
    %116 = vector.broadcast %113 : vector<1x128xf32> to vector<4x128xf32>
    %117 = arith.mulf %115, %116 : vector<4x128xf32>
    %c1_37 = arith.constant 1 : index
    %c0_38 = arith.constant 0 : index
    %118 = vector.load %arg5[%c1_37, %c0_38] : memref<16x128xf32, #tpu.memory_space<vmem>>, vector<1x128xf32>
    %119 = vector.extract_strided_slice %110 {offsets = [0, 1], sizes = [4, 1], strides = [1, 1]} : vector<4x8xf32> to vector<4x1xf32>
    %120 = vector.broadcast %119 : vector<4x1xf32> to vector<4x128xf32>
    %121 = vector.broadcast %118 : vector<1x128xf32> to vector<4x128xf32>
    %122 = arith.mulf %120, %121 : vector<4x128xf32>
    %123 = arith.addf %117, %122 : vector<4x128xf32>
    %c2_39 = arith.constant 2 : index
    %c0_40 = arith.constant 0 : index
    %124 = vector.load %arg5[%c2_39, %c0_40] : memref<16x128xf32, #tpu.memory_space<vmem>>, vector<1x128xf32>
    %125 = vector.extract_strided_slice %110 {offsets = [0, 2], sizes = [4, 1], strides = [1, 1]} : vector<4x8xf32> to vector<4x1xf32>
    %126 = vector.broadcast %125 : vector<4x1xf32> to vector<4x128xf32>
    %127 = vector.broadcast %124 : vector<1x128xf32> to vector<4x128xf32>
    %128 = arith.mulf %126, %127 : vector<4x128xf32>
    %129 = arith.addf %123, %128 : vector<4x128xf32>
    %c3_41 = arith.constant 3 : index
    %c0_42 = arith.constant 0 : index
    %130 = vector.load %arg5[%c3_41, %c0_42] : memref<16x128xf32, #tpu.memory_space<vmem>>, vector<1x128xf32>
    %131 = vector.extract_strided_slice %110 {offsets = [0, 3], sizes = [4, 1], strides = [1, 1]} : vector<4x8xf32> to vector<4x1xf32>
    %132 = vector.broadcast %131 : vector<4x1xf32> to vector<4x128xf32>
    %133 = vector.broadcast %130 : vector<1x128xf32> to vector<4x128xf32>
    %134 = arith.mulf %132, %133 : vector<4x128xf32>
    %135 = arith.addf %129, %134 : vector<4x128xf32>
    %c4_43 = arith.constant 4 : index
    %c0_44 = arith.constant 0 : index
    %136 = vector.load %arg5[%c4_43, %c0_44] : memref<16x128xf32, #tpu.memory_space<vmem>>, vector<1x128xf32>
    %137 = vector.extract_strided_slice %110 {offsets = [0, 4], sizes = [4, 1], strides = [1, 1]} : vector<4x8xf32> to vector<4x1xf32>
    %138 = vector.broadcast %137 : vector<4x1xf32> to vector<4x128xf32>
    %139 = vector.broadcast %136 : vector<1x128xf32> to vector<4x128xf32>
    %140 = arith.mulf %138, %139 : vector<4x128xf32>
    %141 = arith.addf %135, %140 : vector<4x128xf32>
    %c5_45 = arith.constant 5 : index
    %c0_46 = arith.constant 0 : index
    %142 = vector.load %arg5[%c5_45, %c0_46] : memref<16x128xf32, #tpu.memory_space<vmem>>, vector<1x128xf32>
    %143 = vector.extract_strided_slice %110 {offsets = [0, 5], sizes = [4, 1], strides = [1, 1]} : vector<4x8xf32> to vector<4x1xf32>
    %144 = vector.broadcast %143 : vector<4x1xf32> to vector<4x128xf32>
    %145 = vector.broadcast %142 : vector<1x128xf32> to vector<4x128xf32>
    %146 = arith.mulf %144, %145 : vector<4x128xf32>
    %147 = arith.addf %141, %146 : vector<4x128xf32>
    %c6_47 = arith.constant 6 : index
    %c0_48 = arith.constant 0 : index
    %148 = vector.load %arg5[%c6_47, %c0_48] : memref<16x128xf32, #tpu.memory_space<vmem>>, vector<1x128xf32>
    %149 = vector.extract_strided_slice %110 {offsets = [0, 6], sizes = [4, 1], strides = [1, 1]} : vector<4x8xf32> to vector<4x1xf32>
    %150 = vector.broadcast %149 : vector<4x1xf32> to vector<4x128xf32>
    %151 = vector.broadcast %148 : vector<1x128xf32> to vector<4x128xf32>
    %152 = arith.mulf %150, %151 : vector<4x128xf32>
    %153 = arith.addf %147, %152 : vector<4x128xf32>
    %c7_49 = arith.constant 7 : index
    %c0_50 = arith.constant 0 : index
    %154 = vector.load %arg5[%c7_49, %c0_50] : memref<16x128xf32, #tpu.memory_space<vmem>>, vector<1x128xf32>
    %155 = vector.extract_strided_slice %110 {offsets = [0, 7], sizes = [4, 1], strides = [1, 1]} : vector<4x8xf32> to vector<4x1xf32>
    %156 = vector.broadcast %155 : vector<4x1xf32> to vector<4x128xf32>
    %157 = vector.broadcast %154 : vector<1x128xf32> to vector<4x128xf32>
    %158 = arith.mulf %156, %157 : vector<4x128xf32>
    %159 = arith.addf %153, %158 : vector<4x128xf32>
    %160 = vector.broadcast %112 : vector<4x1xf32> to vector<4x128xf32>
    %161 = arith.addf %159, %160 : vector<4x128xf32>
    %cst_51 = arith.constant 0.000000e+00 : f32
    %162 = vector.broadcast %cst_51 : f32 to vector<4x128xf32>
    %163 = arith.cmpf ogt, %161, %162 : vector<4x128xf32>
    %cst_52 = arith.constant 0.00999999977 : f32
    %164 = vector.broadcast %cst_52 : f32 to vector<4x128xf32>
    %165 = arith.mulf %164, %161 : vector<4x128xf32>
    %166 = arith.select %163, %161, %165 : vector<4x128xi1>, vector<4x128xf32>
    %c0_53 = arith.constant 0 : index
    %c0_54 = arith.constant 0 : index
    %167 = vector.load %arg5[%c0_53, %c0_54] : memref<16x128xf32, #tpu.memory_space<vmem>>, vector<4x128xf32>
    tpu.vector_store %arg5[%c0_53, %c0_54], %166 {strides = array<i32>} : memref<16x128xf32, #tpu.memory_space<vmem>>, vector<4x128xf32>,
    %c2_55 = arith.constant 2 : index
    %c0_56 = arith.constant 0 : index
    %c0_57 = arith.constant 0 : index
    %168 = vector.load %arg2[%c2_55, %c0_56, %c0_57] : memref<5x16x16xf32, #tpu.memory_space<vmem>>, vector<1x4x4xf32>
    %169 = vector.shape_cast %168 : vector<1x4x4xf32> to vector<4x4xf32>
    %c2_58 = arith.constant 2 : index
    %c0_59 = arith.constant 0 : index
    %c0_60 = arith.constant 0 : index
    %170 = vector.load %arg3[%c2_58, %c0_59, %c0_60] : memref<5x16x1xf32, #tpu.memory_space<vmem>>, vector<1x4x1xf32>
    %171 = vector.shape_cast %170 : vector<1x4x1xf32> to vector<4x1xf32>
    %c0_61 = arith.constant 0 : index
    %c0_62 = arith.constant 0 : index
    %172 = vector.load %arg5[%c0_61, %c0_62] : memref<16x128xf32, #tpu.memory_space<vmem>>, vector<1x128xf32>
    %173 = vector.extract_strided_slice %169 {offsets = [0, 0], sizes = [4, 1], strides = [1, 1]} : vector<4x4xf32> to vector<4x1xf32>
    %174 = vector.broadcast %173 : vector<4x1xf32> to vector<4x128xf32>
    %175 = vector.broadcast %172 : vector<1x128xf32> to vector<4x128xf32>
    %176 = arith.mulf %174, %175 : vector<4x128xf32>
    %c1_63 = arith.constant 1 : index
    %c0_64 = arith.constant 0 : index
    %177 = vector.load %arg5[%c1_63, %c0_64] : memref<16x128xf32, #tpu.memory_space<vmem>>, vector<1x128xf32>
    %178 = vector.extract_strided_slice %169 {offsets = [0, 1], sizes = [4, 1], strides = [1, 1]} : vector<4x4xf32> to vector<4x1xf32>
    %179 = vector.broadcast %178 : vector<4x1xf32> to vector<4x128xf32>
    %180 = vector.broadcast %177 : vector<1x128xf32> to vector<4x128xf32>
    %181 = arith.mulf %179, %180 : vector<4x128xf32>
    %182 = arith.addf %176, %181 : vector<4x128xf32>
    %c2_65 = arith.constant 2 : index
    %c0_66 = arith.constant 0 : index
    %183 = vector.load %arg5[%c2_65, %c0_66] : memref<16x128xf32, #tpu.memory_space<vmem>>, vector<1x128xf32>
    %184 = vector.extract_strided_slice %169 {offsets = [0, 2], sizes = [4, 1], strides = [1, 1]} : vector<4x4xf32> to vector<4x1xf32>
    %185 = vector.broadcast %184 : vector<4x1xf32> to vector<4x128xf32>
    %186 = vector.broadcast %183 : vector<1x128xf32> to vector<4x128xf32>
    %187 = arith.mulf %185, %186 : vector<4x128xf32>
    %188 = arith.addf %182, %187 : vector<4x128xf32>
    %c3_67 = arith.constant 3 : index
    %c0_68 = arith.constant 0 : index
    %189 = vector.load %arg5[%c3_67, %c0_68] : memref<16x128xf32, #tpu.memory_space<vmem>>, vector<1x128xf32>
    %190 = vector.extract_strided_slice %169 {offsets = [0, 3], sizes = [4, 1], strides = [1, 1]} : vector<4x4xf32> to vector<4x1xf32>
    %191 = vector.broadcast %190 : vector<4x1xf32> to vector<4x128xf32>
    %192 = vector.broadcast %189 : vector<1x128xf32> to vector<4x128xf32>
    %193 = arith.mulf %191, %192 : vector<4x128xf32>
    %194 = arith.addf %188, %193 : vector<4x128xf32>
    %195 = vector.broadcast %171 : vector<4x1xf32> to vector<4x128xf32>
    %196 = arith.addf %194, %195 : vector<4x128xf32>
    %cst_69 = arith.constant 0.000000e+00 : f32
    %197 = vector.broadcast %cst_69 : f32 to vector<4x128xf32>
    %198 = arith.cmpf ogt, %196, %197 : vector<4x128xf32>
    %cst_70 = arith.constant 0.00999999977 : f32
    %199 = vector.broadcast %cst_70 : f32 to vector<4x128xf32>
    %200 = arith.mulf %199, %196 : vector<4x128xf32>
    %201 = arith.select %198, %196, %200 : vector<4x128xi1>, vector<4x128xf32>
    %c0_71 = arith.constant 0 : index
    %c0_72 = arith.constant 0 : index
    %202 = vector.load %arg5[%c0_71, %c0_72] : memref<16x128xf32, #tpu.memory_space<vmem>>, vector<4x128xf32>
    tpu.vector_store %arg5[%c0_71, %c0_72], %201 {strides = array<i32>} : memref<16x128xf32, #tpu.memory_space<vmem>>, vector<4x128xf32>,
    %c3_73 = arith.constant 3 : index
    %c0_74 = arith.constant 0 : index
    %c0_75 = arith.constant 0 : index
    %203 = vector.load %arg2[%c3_73, %c0_74, %c0_75] : memref<5x16x16xf32, #tpu.memory_space<vmem>>, vector<1x8x4xf32>
    %204 = vector.shape_cast %203 : vector<1x8x4xf32> to vector<8x4xf32>
    %c3_76 = arith.constant 3 : index
    %c0_77 = arith.constant 0 : index
    %c0_78 = arith.constant 0 : index
    %205 = vector.load %arg3[%c3_76, %c0_77, %c0_78] : memref<5x16x1xf32, #tpu.memory_space<vmem>>, vector<1x8x1xf32>
    %206 = vector.shape_cast %205 : vector<1x8x1xf32> to vector<8x1xf32>
    %c0_79 = arith.constant 0 : index
    %c0_80 = arith.constant 0 : index
    %207 = vector.load %arg5[%c0_79, %c0_80] : memref<16x128xf32, #tpu.memory_space<vmem>>, vector<1x128xf32>
    %208 = vector.extract_strided_slice %204 {offsets = [0, 0], sizes = [8, 1], strides = [1, 1]} : vector<8x4xf32> to vector<8x1xf32>
    %209 = vector.broadcast %208 : vector<8x1xf32> to vector<8x128xf32>
    %210 = vector.broadcast %207 : vector<1x128xf32> to vector<8x128xf32>
    %211 = arith.mulf %209, %210 : vector<8x128xf32>
    %c1_81 = arith.constant 1 : index
    %c0_82 = arith.constant 0 : index
    %212 = vector.load %arg5[%c1_81, %c0_82] : memref<16x128xf32, #tpu.memory_space<vmem>>, vector<1x128xf32>
    %213 = vector.extract_strided_slice %204 {offsets = [0, 1], sizes = [8, 1], strides = [1, 1]} : vector<8x4xf32> to vector<8x1xf32>
    %214 = vector.broadcast %213 : vector<8x1xf32> to vector<8x128xf32>
    %215 = vector.broadcast %212 : vector<1x128xf32> to vector<8x128xf32>
    %216 = arith.mulf %214, %215 : vector<8x128xf32>
    %217 = arith.addf %211, %216 : vector<8x128xf32>
    %c2_83 = arith.constant 2 : index
    %c0_84 = arith.constant 0 : index
    %218 = vector.load %arg5[%c2_83, %c0_84] : memref<16x128xf32, #tpu.memory_space<vmem>>, vector<1x128xf32>
    %219 = vector.extract_strided_slice %204 {offsets = [0, 2], sizes = [8, 1], strides = [1, 1]} : vector<8x4xf32> to vector<8x1xf32>
    %220 = vector.broadcast %219 : vector<8x1xf32> to vector<8x128xf32>
    %221 = vector.broadcast %218 : vector<1x128xf32> to vector<8x128xf32>
    %222 = arith.mulf %220, %221 : vector<8x128xf32>
    %223 = arith.addf %217, %222 : vector<8x128xf32>
    %c3_85 = arith.constant 3 : index
    %c0_86 = arith.constant 0 : index
    %224 = vector.load %arg5[%c3_85, %c0_86] : memref<16x128xf32, #tpu.memory_space<vmem>>, vector<1x128xf32>
    %225 = vector.extract_strided_slice %204 {offsets = [0, 3], sizes = [8, 1], strides = [1, 1]} : vector<8x4xf32> to vector<8x1xf32>
    %226 = vector.broadcast %225 : vector<8x1xf32> to vector<8x128xf32>
    %227 = vector.broadcast %224 : vector<1x128xf32> to vector<8x128xf32>
    %228 = arith.mulf %226, %227 : vector<8x128xf32>
    %229 = arith.addf %223, %228 : vector<8x128xf32>
    %230 = vector.broadcast %206 : vector<8x1xf32> to vector<8x128xf32>
    %231 = arith.addf %229, %230 : vector<8x128xf32>
    %cst_87 = arith.constant 0.000000e+00 : f32
    %232 = vector.broadcast %cst_87 : f32 to vector<8x128xf32>
    %233 = arith.cmpf ogt, %231, %232 : vector<8x128xf32>
    %cst_88 = arith.constant 0.00999999977 : f32
    %234 = vector.broadcast %cst_88 : f32 to vector<8x128xf32>
    %235 = arith.mulf %234, %231 : vector<8x128xf32>
    %236 = arith.select %233, %231, %235 : vector<8x128xi1>, vector<8x128xf32>
    %c0_89 = arith.constant 0 : index
    %c0_90 = arith.constant 0 : index
    %237 = vector.load %arg5[%c0_89, %c0_90] : memref<16x128xf32, #tpu.memory_space<vmem>>, vector<8x128xf32>
    tpu.vector_store %arg5[%c0_89, %c0_90], %236 {strides = array<i32>} : memref<16x128xf32, #tpu.memory_space<vmem>>, vector<8x128xf32>,
    %c4_91 = arith.constant 4 : index
    %c0_92 = arith.constant 0 : index
    %c0_93 = arith.constant 0 : index
    %238 = vector.load %arg2[%c4_91, %c0_92, %c0_93] : memref<5x16x16xf32, #tpu.memory_space<vmem>>, vector<1x16x8xf32>
    %239 = vector.shape_cast %238 : vector<1x16x8xf32> to vector<16x8xf32>
    %c4_94 = arith.constant 4 : index
    %c0_95 = arith.constant 0 : index
    %c0_96 = arith.constant 0 : index
    %240 = vector.load %arg3[%c4_94, %c0_95, %c0_96] : memref<5x16x1xf32, #tpu.memory_space<vmem>>, vector<1x16x1xf32>
    %241 = vector.shape_cast %240 : vector<1x16x1xf32> to vector<16x1xf32>
    %c0_97 = arith.constant 0 : index
    %c0_98 = arith.constant 0 : index
    %242 = vector.load %arg5[%c0_97, %c0_98] : memref<16x128xf32, #tpu.memory_space<vmem>>, vector<1x128xf32>
    %243 = vector.extract_strided_slice %239 {offsets = [0, 0], sizes = [16, 1], strides = [1, 1]} : vector<16x8xf32> to vector<16x1xf32>
    %244 = vector.broadcast %243 : vector<16x1xf32> to vector<16x128xf32>
    %245 = vector.broadcast %242 : vector<1x128xf32> to vector<16x128xf32>
    %246 = arith.mulf %244, %245 : vector<16x128xf32>
    %c1_99 = arith.constant 1 : index
    %c0_100 = arith.constant 0 : index
    %247 = vector.load %arg5[%c1_99, %c0_100] : memref<16x128xf32, #tpu.memory_space<vmem>>, vector<1x128xf32>
    %248 = vector.extract_strided_slice %239 {offsets = [0, 1], sizes = [16, 1], strides = [1, 1]} : vector<16x8xf32> to vector<16x1xf32>
    %249 = vector.broadcast %248 : vector<16x1xf32> to vector<16x128xf32>
    %250 = vector.broadcast %247 : vector<1x128xf32> to vector<16x128xf32>
    %251 = arith.mulf %249, %250 : vector<16x128xf32>
    %252 = arith.addf %246, %251 : vector<16x128xf32>
    %c2_101 = arith.constant 2 : index
    %c0_102 = arith.constant 0 : index
    %253 = vector.load %arg5[%c2_101, %c0_102] : memref<16x128xf32, #tpu.memory_space<vmem>>, vector<1x128xf32>
    %254 = vector.extract_strided_slice %239 {offsets = [0, 2], sizes = [16, 1], strides = [1, 1]} : vector<16x8xf32> to vector<16x1xf32>
    %255 = vector.broadcast %254 : vector<16x1xf32> to vector<16x128xf32>
    %256 = vector.broadcast %253 : vector<1x128xf32> to vector<16x128xf32>
    %257 = arith.mulf %255, %256 : vector<16x128xf32>
    %258 = arith.addf %252, %257 : vector<16x128xf32>
    %c3_103 = arith.constant 3 : index
    %c0_104 = arith.constant 0 : index
    %259 = vector.load %arg5[%c3_103, %c0_104] : memref<16x128xf32, #tpu.memory_space<vmem>>, vector<1x128xf32>
    %260 = vector.extract_strided_slice %239 {offsets = [0, 3], sizes = [16, 1], strides = [1, 1]} : vector<16x8xf32> to vector<16x1xf32>
    %261 = vector.broadcast %260 : vector<16x1xf32> to vector<16x128xf32>
    %262 = vector.broadcast %259 : vector<1x128xf32> to vector<16x128xf32>
    %263 = arith.mulf %261, %262 : vector<16x128xf32>
    %264 = arith.addf %258, %263 : vector<16x128xf32>
    %c4_105 = arith.constant 4 : index
    %c0_106 = arith.constant 0 : index
    %265 = vector.load %arg5[%c4_105, %c0_106] : memref<16x128xf32, #tpu.memory_space<vmem>>, vector<1x128xf32>
    %266 = vector.extract_strided_slice %239 {offsets = [0, 4], sizes = [16, 1], strides = [1, 1]} : vector<16x8xf32> to vector<16x1xf32>
    %267 = vector.broadcast %266 : vector<16x1xf32> to vector<16x128xf32>
    %268 = vector.broadcast %265 : vector<1x128xf32> to vector<16x128xf32>
    %269 = arith.mulf %267, %268 : vector<16x128xf32>
    %270 = arith.addf %264, %269 : vector<16x128xf32>
    %c5_107 = arith.constant 5 : index
    %c0_108 = arith.constant 0 : index
    %271 = vector.load %arg5[%c5_107, %c0_108] : memref<16x128xf32, #tpu.memory_space<vmem>>, vector<1x128xf32>
    %272 = vector.extract_strided_slice %239 {offsets = [0, 5], sizes = [16, 1], strides = [1, 1]} : vector<16x8xf32> to vector<16x1xf32>
    %273 = vector.broadcast %272 : vector<16x1xf32> to vector<16x128xf32>
    %274 = vector.broadcast %271 : vector<1x128xf32> to vector<16x128xf32>
    %275 = arith.mulf %273, %274 : vector<16x128xf32>
    %276 = arith.addf %270, %275 : vector<16x128xf32>
    %c6_109 = arith.constant 6 : index
    %c0_110 = arith.constant 0 : index
    %277 = vector.load %arg5[%c6_109, %c0_110] : memref<16x128xf32, #tpu.memory_space<vmem>>, vector<1x128xf32>
    %278 = vector.extract_strided_slice %239 {offsets = [0, 6], sizes = [16, 1], strides = [1, 1]} : vector<16x8xf32> to vector<16x1xf32>
    %279 = vector.broadcast %278 : vector<16x1xf32> to vector<16x128xf32>
    %280 = vector.broadcast %277 : vector<1x128xf32> to vector<16x128xf32>
    %281 = arith.mulf %279, %280 : vector<16x128xf32>
    %282 = arith.addf %276, %281 : vector<16x128xf32>
    %c7_111 = arith.constant 7 : index
    %c0_112 = arith.constant 0 : index
    %283 = vector.load %arg5[%c7_111, %c0_112] : memref<16x128xf32, #tpu.memory_space<vmem>>, vector<1x128xf32>
    %284 = vector.extract_strided_slice %239 {offsets = [0, 7], sizes = [16, 1], strides = [1, 1]} : vector<16x8xf32> to vector<16x1xf32>
    %285 = vector.broadcast %284 : vector<16x1xf32> to vector<16x128xf32>
    %286 = vector.broadcast %283 : vector<1x128xf32> to vector<16x128xf32>
    %287 = arith.mulf %285, %286 : vector<16x128xf32>
    %288 = arith.addf %282, %287 : vector<16x128xf32>
    %289 = vector.broadcast %241 : vector<16x1xf32> to vector<16x128xf32>
    %290 = arith.addf %288, %289 : vector<16x128xf32>
    %c0_113 = arith.constant 0 : index
    %c0_114 = arith.constant 0 : index
    %291 = vector.load %arg4[%c0_113, %c0_114] : memref<16x128xf32, #tpu.memory_space<vmem>>, vector<16x128xf32>
    tpu.vector_store %arg4[%c0_113, %c0_114], %290 {strides = array<i32>} : memref<16x128xf32, #tpu.memory_space<vmem>>, vector<16x128xf32>,
    return
  }
  func.func @transform_0(%arg0: i32) -> (i32, i32) {
    %c0_i32 = arith.constant 0 : i32
    %c0_i32_0 = arith.constant 0 : i32
    return %c0_i32, %arg0 : i32, i32
  }
  func.func @transform_1(%arg0: i32) -> (i32, i32, i32) {
    %c0_i32 = arith.constant 0 : i32
    %c0_i32_0 = arith.constant 0 : i32
    %c0_i32_1 = arith.constant 0 : i32
    %c0_i32_2 = arith.constant 0 : i32
    return %c0_i32, %c0_i32_0, %c0_i32_1 : i32, i32, i32
  }
  func.func @transform_2(%arg0: i32) -> (i32, i32, i32) {
    %c0_i32 = arith.constant 0 : i32
    %c0_i32_0 = arith.constant 0 : i32
    %c0_i32_1 = arith.constant 0 : i32
    %c0_i32_2 = arith.constant 0 : i32
    return %c0_i32, %c0_i32_0, %c0_i32_1 : i32, i32, i32
  }
  func.func @transform_3(%arg0: i32) -> (i32, i32) {
    %c0_i32 = arith.constant 0 : i32
    %c0_i32_0 = arith.constant 0 : i32
    return %c0_i32, %arg0 : i32, i32
  }
}

</mosaic_0001>

<llo_original>
// kernel: tpu_custom_call.1
$region0: #{tpu_custom_call.1}
  #allocation0 [shape = 'u32[]', space=smem, size = 0x4, offset = 0x4, fixed_abs, tag = 'smem constant byte address 0x4 - core index']
  #allocation1 [shape = 'u32[144,128]{1,0:T(1,128)}', space=vmem, size = 0x12000, scoped, tag = 'internal scratch']
  %s0 = inlined_call_operand.hbm [shape: f32[8,128], index: 0, kind: input, shape index: {}]
  %s1 = inlined_call_operand.hbm [shape: f32[8,128], index: 1, kind: output, shape index: {}]
  %s2 = sld [smem:[#allocation0]]
  $region18: #{tpu_custom_call.1} parent=0
    _
  %s4 = ssub.s32 1, %s2
  %s5 = scalar_select 0, %s4, %s2
  $region1: #{tpu_custom_call.1} parent=0
    #allocation2 [shape = 'u8[4096]{0}', space=vmem, size = 0x1000, scoped, tag = 'input window, operand 0, single buffered']
    #allocation3 [shape = 's32[1]{0}', space=sflag, size = 0x4, scoped, tag = 'scoped memory for tpu_custom_call.1']
    #allocation4 [shape = 's32[1]{0}', space=sflag, size = 0x4, scoped, tag = 'scoped memory for tpu_custom_call.1']
    #allocation5 [shape = 'u8[4096]{0}', space=vmem, size = 0x1000, scoped, tag = 'output window, operand 0, single buffered']
    %6 = vsyncpa [#allocation3], 0
    %7 = vsyncpa [#allocation4], 0
    // Predicated region
    $region2: #{tpu_custom_call.1} parent=1 // pred_check
      _
    $region3: #{tpu_custom_call.1} parent=1 // pred_check_branch
      %9 = sbr.rel (0) target = $region5
    $region4: #{tpu_custom_call.1} parent=1 // pred_region
      %s11 = ssub.s32 128, 128
      %12 = vsyncadd [#allocation3], %s11
      %s14 = sshll.u32 [#allocation2], 4
      %s15 = int_to_ptr.vmem [resolvable:$true] %s14
      %17 = dma.hbm_to_vmem [thread:$0]  %s0, 128, %s15, [#allocation3]
    $region5: #{tpu_custom_call.1} parent=1 // pred_fallthru
      _
    // Predicated region
    $region6: #{tpu_custom_call.1} parent=1 // pred_check
      _
    $region7: #{tpu_custom_call.1} parent=1 // pred_check_branch
      %19 = sbr.rel (0) target = $region9
    $region8: #{tpu_custom_call.1} parent=1 // pred_region
      %20 = dma.done [#allocation3], 128
    $region9: #{tpu_custom_call.1} parent=1 // pred_fallthru
      _
    %v21 = vld [vmem:[#allocation2 + $0x1] ss:$0 sm:$0xff]
    %22 = vst [vmem:[#allocation5] sm:$0xff] %v21
    // Predicated region
    $region10: #{tpu_custom_call.1} parent=1 // pred_check
      _
    $region11: #{tpu_custom_call.1} parent=1 // pred_check_branch
      %24 = sbr.rel (0) target = $region13
    $region12: #{tpu_custom_call.1} parent=1 // pred_region
      %s26 = ssub.s32 128, 128
      %27 = vsyncadd [#allocation4], %s26
      %s29 = sshll.u32 [#allocation5], 4
      %s30 = int_to_ptr.vmem [resolvable:$true] %s29
      %32 = dma.vmem_to_hbm [thread:$0]  %s30, 128, %s1, [#allocation4]
    $region13: #{tpu_custom_call.1} parent=1 // pred_fallthru
      _
    // Predicated region
    $region14: #{tpu_custom_call.1} parent=1 // pred_check
      _
    $region15: #{tpu_custom_call.1} parent=1 // pred_check_branch
      %34 = sbr.rel (0) target = $region17
    $region16: #{tpu_custom_call.1} parent=1 // pred_region
      %35 = dma.done [#allocation4], 128
    $region17: #{tpu_custom_call.1} parent=1 // pred_fallthru
      _
    %36 = vsyncpa [#allocation3], 1
    %37 = vsyncpa [#allocation4], 1

// kernel: forward.1
$region0: #{forward.1}
  #allocation0 [shape = 'u32[]', space=smem, size = 0x4, offset = 0x4, fixed_abs, tag = 'smem constant byte address 0x4 - core index']
  #allocation1 [shape = 'u32[144,128]{1,0:T(1,128)}', space=vmem, size = 0x12000, scoped, tag = 'internal scratch']
  #allocation2 [shape = 'f32[16,128]{1,0:T(8,128)}', space=vmem, size = 0x2000, scoped, tag = 'scratch operand']
  %s0 = inlined_call_operand.vmem [shape: f32[16,128], index: 0, kind: input, shape index: {}]
  %s1 = inlined_call_operand.hbm [shape: f32[5,16,16], index: 1, kind: input, shape index: {}]
  %s2 = inlined_call_operand.hbm [shape: f32[5,16,1], index: 2, kind: input, shape index: {}]
  %s3 = inlined_call_operand.vmem [shape: f32[16,128], index: 3, kind: output, shape index: {}]
  %s4 = sld [smem:[#allocation0]]
  $region30: #{forward.1} parent=0
    _
  %s6 = ssub.s32 1, %s4
  %s7 = scalar_select 0, %s6, %s4
  $region1: #{forward.1} parent=0
    #allocation3 [shape = 'u8[40960]{0}', space=vmem, size = 0xa000, scoped, tag = 'input window, operand 1, single buffered']
    #allocation4 [shape = 's32[1]{0}', space=sflag, size = 0x4, scoped, tag = 'scoped memory for forward.1']
    #allocation5 [shape = 'u8[40960]{0}', space=vmem, size = 0xa000, scoped, tag = 'input window, operand 2, single buffered']
    #allocation6 [shape = 's32[1]{0}', space=sflag, size = 0x4, scoped, tag = 'scoped memory for forward.1']
    %8 = vsyncpa [#allocation4], 0
    %9 = vsyncpa [#allocation6], 0
    // Predicated region
    $region2: #{forward.1} parent=1 // pred_check
      _
    $region3: #{forward.1} parent=1 // pred_check_branch
      %11 = sbr.rel (0) target = $region5
    $region4: #{forward.1} parent=1 // pred_region
      _
    $region5: #{forward.1} parent=1 // pred_fallthru
      _
    // Predicated region
    $region6: #{forward.1} parent=1 // pred_check
      _
    $region7: #{forward.1} parent=1 // pred_check_branch
      %13 = sbr.rel (0) target = $region9
    $region8: #{forward.1} parent=1 // pred_region
      %s15 = ssub.s32 1280, 1280
      %16 = vsyncadd [#allocation4], %s15
      %s17 = sshll.u32 [#allocation3], 4
      %s18 = int_to_ptr.vmem [resolvable:$true] %s17
      %23 = dma.hbm_to_vmem [thread:$0]  %s1, 1280, %s18, [#allocation4], 128, 128, 8
    $region9: #{forward.1} parent=1 // pred_fallthru
      _
    // Predicated region
    $region10: #{forward.1} parent=1 // pred_check
      _
    $region11: #{forward.1} parent=1 // pred_check_branch
      %25 = sbr.rel (0) target = $region13
    $region12: #{forward.1} parent=1 // pred_region
      %s27 = ssub.s32 1280, 1280
      %28 = vsyncadd [#allocation6], %s27
      %s29 = sshll.u32 [#allocation5], 4
      %s30 = int_to_ptr.vmem [resolvable:$true] %s29
      %35 = dma.hbm_to_vmem [thread:$0]  %s2, 1280, %s30, [#allocation6], 128, 128, 8
    $region13: #{forward.1} parent=1 // pred_fallthru
      _
    // Predicated region
    $region14: #{forward.1} parent=1 // pred_check
      _
    $region15: #{forward.1} parent=1 // pred_check_branch
      %37 = sbr.rel (0) target = $region17
    $region16: #{forward.1} parent=1 // pred_region
      %38 = dma.done [#allocation4], 1280
    $region17: #{forward.1} parent=1 // pred_fallthru
      _
    // Predicated region
    $region18: #{forward.1} parent=1 // pred_check
      _
    $region19: #{forward.1} parent=1 // pred_check_branch
      %40 = sbr.rel (0) target = $region21
    $region20: #{forward.1} parent=1 // pred_region
      %41 = dma.done [#allocation6], 1280
    $region21: #{forward.1} parent=1 // pred_fallthru
      _
    %v42 = vld [vmem:[%s0] sm:$0xff]
    %v43 = vld [vmem:[%s0 + $0x8] sm:$0xff]
    %44 = vst [vmem:[#allocation2] sm:$0xff] %v42
    %45 = vst [vmem:[#allocation2 + $0x8] sm:$0xff] %v43
    %v46 = vld [vmem:[#allocation3] sm:$0xff]
    %v47 = vld [vmem:[#allocation5] sm:$0xff]
    %v48 = vld [vmem:[#allocation2] sm:$0x1]
    %50 = vset.pattern.permute.xlu0 0
    %51 = vperm.xlu0 %50, %v46
    %v52 = vpop.permute.xlu0 %51
    %v54 = vlaneseq
    %v55 = vshrl.u32 %v54, 7
    %v56 = vsub.s32 0, %v55
    %v57 = vrot.slane %v48, %v56
    %v58 = vmul.f32 %v52, %v57
    %v59 = vld [vmem:[#allocation2 + $0x1] sm:$0x1]
    %60 = vset.pattern.permute.xlu0 1
    %61 = vperm.xlu0 %60, %v46
    %v62 = vpop.permute.xlu0 %61
    %v64 = vlaneseq
    %v65 = vshrl.u32 %v64, 7
    %v66 = vsub.s32 0, %v65
    %v67 = vrot.slane %v59, %v66
    %v68 = vmul.f32 %v62, %v67
    %v69 = vadd.f32 %v58, %v68
    %v70 = vld [vmem:[#allocation2 + $0x2] sm:$0x1]
    %71 = vset.pattern.permute.xlu0 2
    %72 = vperm.xlu0 %71, %v46
    %v73 = vpop.permute.xlu0 %72
    %v75 = vlaneseq
    %v76 = vshrl.u32 %v75, 7
    %v77 = vsub.s32 0, %v76
    %v78 = vrot.slane %v70, %v77
    %v79 = vmul.f32 %v73, %v78
    %v80 = vadd.f32 %v69, %v79
    %v81 = vld [vmem:[#allocation2 + $0x3] sm:$0x1]
    %82 = vset.pattern.permute.xlu0 3
    %83 = vperm.xlu0 %82, %v46
    %v84 = vpop.permute.xlu0 %83
    %v86 = vlaneseq
    %v87 = vshrl.u32 %v86, 7
    %v88 = vsub.s32 0, %v87
    %v89 = vrot.slane %v81, %v88
    %v90 = vmul.f32 %v84, %v89
    %v91 = vadd.f32 %v80, %v90
    %v92 = vld [vmem:[#allocation2 + $0x4] sm:$0x1]
    %93 = vset.pattern.permute.xlu0 4
    %94 = vperm.xlu0 %93, %v46
    %v95 = vpop.permute.xlu0 %94
    %v97 = vlaneseq
    %v98 = vshrl.u32 %v97, 7
    %v99 = vsub.s32 0, %v98
    %v100 = vrot.slane %v92, %v99
    %v101 = vmul.f32 %v95, %v100
    %v102 = vadd.f32 %v91, %v101
    %v103 = vld [vmem:[#allocation2 + $0x5] sm:$0x1]
    %104 = vset.pattern.permute.xlu0 5
    %105 = vperm.xlu0 %104, %v46
    %v106 = vpop.permute.xlu0 %105
    %v108 = vlaneseq
    %v109 = vshrl.u32 %v108, 7
    %v110 = vsub.s32 0, %v109
    %v111 = vrot.slane %v103, %v110
    %v112 = vmul.f32 %v106, %v111
    %v113 = vadd.f32 %v102, %v112
    %v114 = vld [vmem:[#allocation2 + $0x6] sm:$0x1]
    %115 = vset.pattern.permute.xlu0 6
    %116 = vperm.xlu0 %115, %v46
    %v117 = vpop.permute.xlu0 %116
    %v119 = vlaneseq
    %v120 = vshrl.u32 %v119, 7
    %v121 = vsub.s32 0, %v120
    %v122 = vrot.slane %v114, %v121
    %v123 = vmul.f32 %v117, %v122
    %v124 = vadd.f32 %v113, %v123
    %v125 = vld [vmem:[#allocation2 + $0x7] sm:$0x1]
    %126 = vset.pattern.permute.xlu0 7
    %127 = vperm.xlu0 %126, %v46
    %v128 = vpop.permute.xlu0 %127
    %v130 = vlaneseq
    %v131 = vshrl.u32 %v130, 7
    %v132 = vsub.s32 0, %v131
    %v133 = vrot.slane %v125, %v132
    %v134 = vmul.f32 %v128, %v133
    %v135 = vadd.f32 %v124, %v134
    %v136 = vld [vmem:[#allocation2 + $0x8] sm:$0x1]
    %137 = vset.pattern.permute.xlu0 8
    %138 = vperm.xlu0 %137, %v46
    %v139 = vpop.permute.xlu0 %138
    %v141 = vlaneseq
    %v142 = vshrl.u32 %v141, 7
    %v143 = vsub.s32 0, %v142
    %v144 = vrot.slane %v136, %v143
    %v145 = vmul.f32 %v139, %v144
    %v146 = vadd.f32 %v135, %v145
    %v147 = vld [vmem:[#allocation2 + $0x9] sm:$0x1]
    %148 = vset.pattern.permute.xlu0 9
    %149 = vperm.xlu0 %148, %v46
    %v150 = vpop.permute.xlu0 %149
    %v152 = vlaneseq
    %v153 = vshrl.u32 %v152, 7
    %v154 = vsub.s32 0, %v153
    %v155 = vrot.slane %v147, %v154
    %v156 = vmul.f32 %v150, %v155
    %v157 = vadd.f32 %v146, %v156
    %v158 = vld [vmem:[#allocation2 + $0xa] sm:$0x1]
    %159 = vset.pattern.permute.xlu0 10
    %160 = vperm.xlu0 %159, %v46
    %v161 = vpop.permute.xlu0 %160
    %v163 = vlaneseq
    %v164 = vshrl.u32 %v163, 7
    %v165 = vsub.s32 0, %v164
    %v166 = vrot.slane %v158, %v165
    %v167 = vmul.f32 %v161, %v166
    %v168 = vadd.f32 %v157, %v167
    %v169 = vld [vmem:[#allocation2 + $0xb] sm:$0x1]
    %170 = vset.pattern.permute.xlu0 11
    %171 = vperm.xlu0 %170, %v46
    %v172 = vpop.permute.xlu0 %171
    %v174 = vlaneseq
    %v175 = vshrl.u32 %v174, 7
    %v176 = vsub.s32 0, %v175
    %v177 = vrot.slane %v169, %v176
    %v178 = vmul.f32 %v172, %v177
    %v179 = vadd.f32 %v168, %v178
    %v180 = vld [vmem:[#allocation2 + $0xc] sm:$0x1]
    %181 = vset.pattern.permute.xlu0 12
    %182 = vperm.xlu0 %181, %v46
    %v183 = vpop.permute.xlu0 %182
    %v185 = vlaneseq
    %v186 = vshrl.u32 %v185, 7
    %v187 = vsub.s32 0, %v186
    %v188 = vrot.slane %v180, %v187
    %v189 = vmul.f32 %v183, %v188
    %v190 = vadd.f32 %v179, %v189
    %v191 = vld [vmem:[#allocation2 + $0xd] sm:$0x1]
    %192 = vset.pattern.permute.xlu0 13
    %193 = vperm.xlu0 %192, %v46
    %v194 = vpop.permute.xlu0 %193
    %v196 = vlaneseq
    %v197 = vshrl.u32 %v196, 7
    %v198 = vsub.s32 0, %v197
    %v199 = vrot.slane %v191, %v198
    %v200 = vmul.f32 %v194, %v199
    %v201 = vadd.f32 %v190, %v200
    %v202 = vld [vmem:[#allocation2 + $0xe] sm:$0x1]
    %203 = vset.pattern.permute.xlu0 14
    %204 = vperm.xlu0 %203, %v46
    %v205 = vpop.permute.xlu0 %204
    %v207 = vlaneseq
    %v208 = vshrl.u32 %v207, 7
    %v209 = vsub.s32 0, %v208
    %v210 = vrot.slane %v202, %v209
    %v211 = vmul.f32 %v205, %v210
    %v212 = vadd.f32 %v201, %v211
    %v213 = vld [vmem:[#allocation2 + $0xf] sm:$0x1]
    %214 = vset.pattern.permute.xlu0 15
    %215 = vperm.xlu0 %214, %v46
    %v216 = vpop.permute.xlu0 %215
    %v218 = vlaneseq
    %v219 = vshrl.u32 %v218, 7
    %v220 = vsub.s32 0, %v219
    %v221 = vrot.slane %v213, %v220
    %v222 = vmul.f32 %v216, %v221
    %v223 = vadd.f32 %v212, %v222
    %225 = vset.pattern.permute.xlu0 0
    %226 = vperm.xlu0 %225, %v47
    %v227 = vpop.permute.xlu0 %226
    %v229 = vadd.f32 %v223, %v227
    %vm230 = vcmp.gt.f32.partialorder %v229, 0.0
    %v231 = vmul.f32 %v229, 0.01
    %v232 = vsel %vm230, %v229, %v231
    %233 = vst [vmem:[#allocation2] sm:$0xff] %v232
    %s234 = scalar_lea.vmem [#allocation3], 16
    %v235 = vld [vmem:[%s234] sm:$0xf]
    %s236 = scalar_lea.vmem [#allocation5], 16
    %v237 = vld [vmem:[%s236] sm:$0xf]
    %v238 = vld [vmem:[#allocation2] sm:$0x1]
    %240 = vset.pattern.permute.xlu0 0
    %241 = vperm.xlu0 %240, %v235
    %v242 = vpop.permute.xlu0 %241
    %v244 = vlaneseq
    %v245 = vshrl.u32 %v244, 7
    %v246 = vsub.s32 0, %v245
    %v247 = vrot.slane %v238, %v246
    %v248 = vmul.f32 %v242, %v247
    %v249 = vld [vmem:[#allocation2 + $0x1] sm:$0x1]
    %250 = vset.pattern.permute.xlu0 1
    %251 = vperm.xlu0 %250, %v235
    %v252 = vpop.permute.xlu0 %251
    %v254 = vlaneseq
    %v255 = vshrl.u32 %v254, 7
    %v256 = vsub.s32 0, %v255
    %v257 = vrot.slane %v249, %v256
    %v258 = vmul.f32 %v252, %v257
    %v259 = vadd.f32 %v248, %v258
    %v260 = vld [vmem:[#allocation2 + $0x2] sm:$0x1]
    %261 = vset.pattern.permute.xlu0 2
    %262 = vperm.xlu0 %261, %v235
    %v263 = vpop.permute.xlu0 %262
    %v265 = vlaneseq
    %v266 = vshrl.u32 %v265, 7
    %v267 = vsub.s32 0, %v266
    %v268 = vrot.slane %v260, %v267
    %v269 = vmul.f32 %v263, %v268
    %v270 = vadd.f32 %v259, %v269
    %v271 = vld [vmem:[#allocation2 + $0x3] sm:$0x1]
    %272 = vset.pattern.permute.xlu0 3
    %273 = vperm.xlu0 %272, %v235
    %v274 = vpop.permute.xlu0 %273
    %v276 = vlaneseq
    %v277 = vshrl.u32 %v276, 7
    %v278 = vsub.s32 0, %v277
    %v279 = vrot.slane %v271, %v278
    %v280 = vmul.f32 %v274, %v279
    %v281 = vadd.f32 %v270, %v280
    %v282 = vld [vmem:[#allocation2 + $0x4] sm:$0x1]
    %283 = vset.pattern.permute.xlu0 4
    %284 = vperm.xlu0 %283, %v235
    %v285 = vpop.permute.xlu0 %284
    %v287 = vlaneseq
    %v288 = vshrl.u32 %v287, 7
    %v289 = vsub.s32 0, %v288
    %v290 = vrot.slane %v282, %v289
    %v291 = vmul.f32 %v285, %v290
    %v292 = vadd.f32 %v281, %v291
    %v293 = vld [vmem:[#allocation2 + $0x5] sm:$0x1]
    %294 = vset.pattern.permute.xlu0 5
    %295 = vperm.xlu0 %294, %v235
    %v296 = vpop.permute.xlu0 %295
    %v298 = vlaneseq
    %v299 = vshrl.u32 %v298, 7
    %v300 = vsub.s32 0, %v299
    %v301 = vrot.slane %v293, %v300
    %v302 = vmul.f32 %v296, %v301
    %v303 = vadd.f32 %v292, %v302
    %v304 = vld [vmem:[#allocation2 + $0x6] sm:$0x1]
    %305 = vset.pattern.permute.xlu0 6
    %306 = vperm.xlu0 %305, %v235
    %v307 = vpop.permute.xlu0 %306
    %v309 = vlaneseq
    %v310 = vshrl.u32 %v309, 7
    %v311 = vsub.s32 0, %v310
    %v312 = vrot.slane %v304, %v311
    %v313 = vmul.f32 %v307, %v312
    %v314 = vadd.f32 %v303, %v313
    %v315 = vld [vmem:[#allocation2 + $0x7] sm:$0x1]
    %316 = vset.pattern.permute.xlu0 7
    %317 = vperm.xlu0 %316, %v235
    %v318 = vpop.permute.xlu0 %317
    %v320 = vlaneseq
    %v321 = vshrl.u32 %v320, 7
    %v322 = vsub.s32 0, %v321
    %v323 = vrot.slane %v315, %v322
    %v324 = vmul.f32 %v318, %v323
    %v325 = vadd.f32 %v314, %v324
    %327 = vset.pattern.permute.xlu0 0
    %328 = vperm.xlu0 %327, %v237
    %v329 = vpop.permute.xlu0 %328
    %v331 = vadd.f32 %v325, %v329
    %vm332 = vcmp.gt.f32.partialorder %v331, 0.0
    %v333 = vmul.f32 %v331, 0.01
    %v334 = vsel %vm332, %v331, %v333
    %335 = vst [vmem:[#allocation2] sm:$0xf] %v334
    %s336 = scalar_lea.vmem [#allocation3], 32
    %v337 = vld [vmem:[%s336] sm:$0xf]
    %s338 = scalar_lea.vmem [#allocation5], 32
    %v339 = vld [vmem:[%s338] sm:$0xf]
    %v340 = vld [vmem:[#allocation2] sm:$0x1]
    %342 = vset.pattern.permute.xlu0 0
    %343 = vperm.xlu0 %342, %v337
    %v344 = vpop.permute.xlu0 %343
    %v346 = vlaneseq
    %v347 = vshrl.u32 %v346, 7
    %v348 = vsub.s32 0, %v347
    %v349 = vrot.slane %v340, %v348
    %v350 = vmul.f32 %v344, %v349
    %v351 = vld [vmem:[#allocation2 + $0x1] sm:$0x1]
    %352 = vset.pattern.permute.xlu0 1
    %353 = vperm.xlu0 %352, %v337
    %v354 = vpop.permute.xlu0 %353
    %v356 = vlaneseq
    %v357 = vshrl.u32 %v356, 7
    %v358 = vsub.s32 0, %v357
    %v359 = vrot.slane %v351, %v358
    %v360 = vmul.f32 %v354, %v359
    %v361 = vadd.f32 %v350, %v360
    %v362 = vld [vmem:[#allocation2 + $0x2] sm:$0x1]
    %363 = vset.pattern.permute.xlu0 2
    %364 = vperm.xlu0 %363, %v337
    %v365 = vpop.permute.xlu0 %364
    %v367 = vlaneseq
    %v368 = vshrl.u32 %v367, 7
    %v369 = vsub.s32 0, %v368
    %v370 = vrot.slane %v362, %v369
    %v371 = vmul.f32 %v365, %v370
    %v372 = vadd.f32 %v361, %v371
    %v373 = vld [vmem:[#allocation2 + $0x3] sm:$0x1]
    %374 = vset.pattern.permute.xlu0 3
    %375 = vperm.xlu0 %374, %v337
    %v376 = vpop.permute.xlu0 %375
    %v378 = vlaneseq
    %v379 = vshrl.u32 %v378, 7
    %v380 = vsub.s32 0, %v379
    %v381 = vrot.slane %v373, %v380
    %v382 = vmul.f32 %v376, %v381
    %v383 = vadd.f32 %v372, %v382
    %385 = vset.pattern.permute.xlu0 0
    %386 = vperm.xlu0 %385, %v339
    %v387 = vpop.permute.xlu0 %386
    %v389 = vadd.f32 %v383, %v387
    %vm390 = vcmp.gt.f32.partialorder %v389, 0.0
    %v391 = vmul.f32 %v389, 0.01
    %v392 = vsel %vm390, %v389, %v391
    %393 = vst [vmem:[#allocation2] sm:$0xf] %v392
    %s394 = scalar_lea.vmem [#allocation3], 48
    %v395 = vld [vmem:[%s394] sm:$0xff]
    %s396 = scalar_lea.vmem [#allocation5], 48
    %v397 = vld [vmem:[%s396] sm:$0xff]
    %v398 = vld [vmem:[#allocation2] sm:$0x1]
    %400 = vset.pattern.permute.xlu0 0
    %401 = vperm.xlu0 %400, %v395
    %v402 = vpop.permute.xlu0 %401
    %v404 = vlaneseq
    %v405 = vshrl.u32 %v404, 7
    %v406 = vsub.s32 0, %v405
    %v407 = vrot.slane %v398, %v406
    %v408 = vmul.f32 %v402, %v407
    %v409 = vld [vmem:[#allocation2 + $0x1] sm:$0x1]
    %410 = vset.pattern.permute.xlu0 1
    %411 = vperm.xlu0 %410, %v395
    %v412 = vpop.permute.xlu0 %411
    %v414 = vlaneseq
    %v415 = vshrl.u32 %v414, 7
    %v416 = vsub.s32 0, %v415
    %v417 = vrot.slane %v409, %v416
    %v418 = vmul.f32 %v412, %v417
    %v419 = vadd.f32 %v408, %v418
    %v420 = vld [vmem:[#allocation2 + $0x2] sm:$0x1]
    %421 = vset.pattern.permute.xlu0 2
    %422 = vperm.xlu0 %421, %v395
    %v423 = vpop.permute.xlu0 %422
    %v425 = vlaneseq
    %v426 = vshrl.u32 %v425, 7
    %v427 = vsub.s32 0, %v426
    %v428 = vrot.slane %v420, %v427
    %v429 = vmul.f32 %v423, %v428
    %v430 = vadd.f32 %v419, %v429
    %v431 = vld [vmem:[#allocation2 + $0x3] sm:$0x1]
    %432 = vset.pattern.permute.xlu0 3
    %433 = vperm.xlu0 %432, %v395
    %v434 = vpop.permute.xlu0 %433
    %v436 = vlaneseq
    %v437 = vshrl.u32 %v436, 7
    %v438 = vsub.s32 0, %v437
    %v439 = vrot.slane %v431, %v438
    %v440 = vmul.f32 %v434, %v439
    %v441 = vadd.f32 %v430, %v440
    %443 = vset.pattern.permute.xlu0 0
    %444 = vperm.xlu0 %443, %v397
    %v445 = vpop.permute.xlu0 %444
    %v447 = vadd.f32 %v441, %v445
    %vm448 = vcmp.gt.f32.partialorder %v447, 0.0
    %v449 = vmul.f32 %v447, 0.01
    %v450 = vsel %vm448, %v447, %v449
    %451 = vst [vmem:[#allocation2] sm:$0xff] %v450
    %s452 = scalar_lea.vmem [#allocation3], 64
    %v453 = vld [vmem:[%s452] sm:$0xff]
    %v454 = vld [vmem:[%s452 + $0x8] sm:$0xff]
    %s455 = scalar_lea.vmem [#allocation5], 64
    %v456 = vld [vmem:[%s455] sm:$0xff]
    %v457 = vld [vmem:[%s455 + $0x8] sm:$0xff]
    %v458 = vld [vmem:[#allocation2] sm:$0x1]
    %460 = vset.pattern.permute.xlu0 0
    %461 = vperm.xlu0 %460, %v453
    %v462 = vpop.permute.xlu0 %461
    %465 = vset.pattern.permute.xlu0 0
    %466 = vperm.xlu0 %465, %v454
    %v467 = vpop.permute.xlu0 %466
    %v469 = vlaneseq
    %v470 = vshrl.u32 %v469, 7
    %v471 = vsub.s32 0, %v470
    %v472 = vrot.slane %v458, %v471
    %v473 = vmul.f32 %v462, %v472
    %v474 = vmul.f32 %v467, %v472
    %v475 = vld [vmem:[#allocation2 + $0x1] sm:$0x1]
    %476 = vset.pattern.permute.xlu0 1
    %477 = vperm.xlu0 %476, %v453
    %v478 = vpop.permute.xlu0 %477
    %480 = vset.pattern.permute.xlu0 1
    %481 = vperm.xlu0 %480, %v454
    %v482 = vpop.permute.xlu0 %481
    %v484 = vlaneseq
    %v485 = vshrl.u32 %v484, 7
    %v486 = vsub.s32 0, %v485
    %v487 = vrot.slane %v475, %v486
    %v488 = vmul.f32 %v478, %v487
    %v489 = vmul.f32 %v482, %v487
    %v490 = vadd.f32 %v473, %v488
    %v491 = vadd.f32 %v474, %v489
    %v492 = vld [vmem:[#allocation2 + $0x2] sm:$0x1]
    %493 = vset.pattern.permute.xlu0 2
    %494 = vperm.xlu0 %493, %v453
    %v495 = vpop.permute.xlu0 %494
    %497 = vset.pattern.permute.xlu0 2
    %498 = vperm.xlu0 %497, %v454
    %v499 = vpop.permute.xlu0 %498
    %v501 = vlaneseq
    %v502 = vshrl.u32 %v501, 7
    %v503 = vsub.s32 0, %v502
    %v504 = vrot.slane %v492, %v503
    %v505 = vmul.f32 %v495, %v504
    %v506 = vmul.f32 %v499, %v504
    %v507 = vadd.f32 %v490, %v505
    %v508 = vadd.f32 %v491, %v506
    %v509 = vld [vmem:[#allocation2 + $0x3] sm:$0x1]
    %510 = vset.pattern.permute.xlu0 3
    %511 = vperm.xlu0 %510, %v453
    %v512 = vpop.permute.xlu0 %511
    %514 = vset.pattern.permute.xlu0 3
    %515 = vperm.xlu0 %514, %v454
    %v516 = vpop.permute.xlu0 %515
    %v518 = vlaneseq
    %v519 = vshrl.u32 %v518, 7
    %v520 = vsub.s32 0, %v519
    %v521 = vrot.slane %v509, %v520
    %v522 = vmul.f32 %v512, %v521
    %v523 = vmul.f32 %v516, %v521
    %v524 = vadd.f32 %v507, %v522
    %v525 = vadd.f32 %v508, %v523
    %v526 = vld [vmem:[#allocation2 + $0x4] sm:$0x1]
    %527 = vset.pattern.permute.xlu0 4
    %528 = vperm.xlu0 %527, %v453
    %v529 = vpop.permute.xlu0 %528
    %531 = vset.pattern.permute.xlu0 4
    %532 = vperm.xlu0 %531, %v454
    %v533 = vpop.permute.xlu0 %532
    %v535 = vlaneseq
    %v536 = vshrl.u32 %v535, 7
    %v537 = vsub.s32 0, %v536
    %v538 = vrot.slane %v526, %v537
    %v539 = vmul.f32 %v529, %v538
    %v540 = vmul.f32 %v533, %v538
    %v541 = vadd.f32 %v524, %v539
    %v542 = vadd.f32 %v525, %v540
    %v543 = vld [vmem:[#allocation2 + $0x5] sm:$0x1]
    %544 = vset.pattern.permute.xlu0 5
    %545 = vperm.xlu0 %544, %v453
    %v546 = vpop.permute.xlu0 %545
    %548 = vset.pattern.permute.xlu0 5
    %549 = vperm.xlu0 %548, %v454
    %v550 = vpop.permute.xlu0 %549
    %v552 = vlaneseq
    %v553 = vshrl.u32 %v552, 7
    %v554 = vsub.s32 0, %v553
    %v555 = vrot.slane %v543, %v554
    %v556 = vmul.f32 %v546, %v555
    %v557 = vmul.f32 %v550, %v555
    %v558 = vadd.f32 %v541, %v556
    %v559 = vadd.f32 %v542, %v557
    %v560 = vld [vmem:[#allocation2 + $0x6] sm:$0x1]
    %561 = vset.pattern.permute.xlu0 6
    %562 = vperm.xlu0 %561, %v453
    %v563 = vpop.permute.xlu0 %562
    %565 = vset.pattern.permute.xlu0 6
    %566 = vperm.xlu0 %565, %v454
    %v567 = vpop.permute.xlu0 %566
    %v569 = vlaneseq
    %v570 = vshrl.u32 %v569, 7
    %v571 = vsub.s32 0, %v570
    %v572 = vrot.slane %v560, %v571
    %v573 = vmul.f32 %v563, %v572
    %v574 = vmul.f32 %v567, %v572
    %v575 = vadd.f32 %v558, %v573
    %v576 = vadd.f32 %v559, %v574
    %v577 = vld [vmem:[#allocation2 + $0x7] sm:$0x1]
    %578 = vset.pattern.permute.xlu0 7
    %579 = vperm.xlu0 %578, %v453
    %v580 = vpop.permute.xlu0 %579
    %582 = vset.pattern.permute.xlu0 7
    %583 = vperm.xlu0 %582, %v454
    %v584 = vpop.permute.xlu0 %583
    %v586 = vlaneseq
    %v587 = vshrl.u32 %v586, 7
    %v588 = vsub.s32 0, %v587
    %v589 = vrot.slane %v577, %v588
    %v590 = vmul.f32 %v580, %v589
    %v591 = vmul.f32 %v584, %v589
    %v592 = vadd.f32 %v575, %v590
    %v593 = vadd.f32 %v576, %v591
    %595 = vset.pattern.permute.xlu0 0
    %596 = vperm.xlu0 %595, %v456
    %v597 = vpop.permute.xlu0 %596
    %600 = vset.pattern.permute.xlu0 0
    %601 = vperm.xlu0 %600, %v457
    %v602 = vpop.permute.xlu0 %601
    %v604 = vadd.f32 %v592, %v597
    %v605 = vadd.f32 %v593, %v602
    %606 = vst [vmem:[%s3] sm:$0xff] %v604
    %607 = vst [vmem:[%s3 + $0x8] sm:$0xff] %v605
    // Predicated region
    $region22: #{forward.1} parent=1 // pred_check
      _
    $region23: #{forward.1} parent=1 // pred_check_branch
      %609 = sbr.rel (0) target = $region25
    $region24: #{forward.1} parent=1 // pred_region
      _
    $region25: #{forward.1} parent=1 // pred_fallthru
      _
    // Predicated region
    $region26: #{forward.1} parent=1 // pred_check
      _
    $region27: #{forward.1} parent=1 // pred_check_branch
      %611 = sbr.rel (0) target = $region29
    $region28: #{forward.1} parent=1 // pred_region
      _
    $region29: #{forward.1} parent=1 // pred_fallthru
      _
    %612 = vsyncpa [#allocation4], 1
    %613 = vsyncpa [#allocation6], 1

</llo_original>
